<compile_context>
chip_gen: v6e
topology: v6e:2x2x1
jax: 0.10.0
libtpu: 0.0.40
codegen_flags: <defaults>
</compile_context>

<pallas_src>
import functools

import jax
import jax.numpy as jnp
from jax.experimental import pallas as pl
from jax.experimental.pallas import tpu as pltpu


def _round_up(x: int, m: int) -> int:
    return ((x + m - 1) // m) * m


def _vqc_expectation(num_qubits: int) -> float:
    """Deterministic expectation of the module's _execute_vqc sampling formula."""
    n_states = 2 ** num_qubits
    # sum(v^2, v=0..N-1) / sum(v, v=0..N-1) = (2N - 1) / 3
    return (2.0 * n_states - 1.0) / 3.0


def _qlstm_kernel(bias_ref, c0_ref, w_ref, a_ref, s_ref,
                  out_ref, hT_ref, cT_ref, *, ev):
    """One grid step == one chunk of TT independent time steps.

    bias_ref : SMEM f32[1]          projection bias
    c0_ref   : VMEM f32[Bp, Hp]     initial cell state (constant block)
    w_ref    : VMEM f32[1, Hp]      projection weight, lane-dense (constant block)
    a_ref    : VMEM f32[TT, 1]      ev^(t+1) for this chunk's time indices
    s_ref    : VMEM f32[TT, 1]      ev^2 * (1 + ev + ... + ev^t) for this chunk
    out_ref  : VMEM f32[Bp, TT]     projected outputs, time on the lane axis
    hT_ref   : VMEM f32[1, Bp, Hp]  chunk-last hidden state
    cT_ref   : VMEM f32[1, Bp, Hp]  chunk-last cell state
    """
    c0 = c0_ref[...]                      # (Bp, Hp)   -- hoisted, loaded once
    w = w_ref[...]                        # (1, Hp)
    a = a_ref[...]                        # (TT, 1)
    s = s_ref[...]                        # (TT, 1)
    bias = bias_ref[0]                    # scalar
    ev_f = jnp.float32(ev)                # o_t gate, compile-time constant

    # Closed form of the constant-gate recurrence, vectorized over the chunk:
    #   c[b, t, h] = ev^(t+1) * c0[b, h] + ev^2 * (1 + ev + ... + ev^t)
    c = a * c0[:, None, :] + s            # (Bp, TT, Hp)
    h = ev_f * jnp.tanh(c)                # h_t = o_t * tanh(c_t)

    # projection Linear(H, 1): VPU multiply + XLU cross-lane reduce (no MXU push).
    out_ref[...] = jnp.sum(h * w, axis=-1) + bias     # (Bp, TT), lane-dense store

    # Chunk-last state.  Coefficient padding replicates step T, so the LAST chunk's
    # value is exactly the final (h_T, c_T); earlier chunks' values are discarded.
    last = c.shape[1] - 1
    cT_ref[...] = c[:, last, :][None]
    hT_ref[...] = h[:, last, :][None]


def _qlstm_run(c_t, proj_w, proj_b, num_qubits, num_steps):
    """Run `num_steps` QLSTM cell steps in one pallas_call (parallel over time chunks).

    Returns (outputs (T, B), h_T (B, H), c_T (B, H)).
    """
    B, H = c_t.shape
    T = int(num_steps)
    assert T >= 1

    Bp = _round_up(max(B, 8), 8)          # sublane-aligned batch tile
    Hp = _round_up(max(H, 128), 128)      # lane-aligned hidden tile

    # Time chunking: lane-dense 128-wide chunks when T is large, else a single
    # (full-array) chunk padded to a multiple of 8.
    if T > 128:
        TT = 128
        NC = -(-T // TT)
    else:
        TT = _round_up(T, 8)
        NC = 1
    T_pad = NC * TT

    ev = _vqc_expectation(num_qubits)
    evf = jnp.float32(ev)

    # Per-step coefficients of the closed form, built with the same f32 repeated
    # multiply/add flavor as the recurrence.  Padding slots replicate step T so the
    # padded output columns / chunk-last state simply duplicate the final step.
    pows = jnp.cumprod(jnp.full((T,), evf, jnp.float32))          # ev^1 .. ev^T
    geo = jnp.cumsum(jnp.concatenate([jnp.ones((1,), jnp.float32), pows[:-1]]))
    offs = (evf * evf) * geo                                      # ev^2 * (1+...+ev^(t-1))
    pad_n = T_pad - T
    a_full = jnp.concatenate(
        [pows, jnp.full((pad_n,), pows[-1], jnp.float32)]).reshape(T_pad, 1)
    s_full = jnp.concatenate(
        [offs, jnp.full((pad_n,), offs[-1], jnp.float32)]).reshape(T_pad, 1)

    # Pad state / weights once (padded weight lanes are zero -> no projection effect).
    c0 = jnp.zeros((Bp, Hp), jnp.float32).at[:B, :H].set(c_t.astype(jnp.float32))
    w = jnp.zeros((1, Hp), jnp.float32).at[0, :H].set(
        proj_w.reshape(-1).astype(jnp.float32))
    bias = jnp.asarray(proj_b, jnp.float32).reshape((1,))

    out_pad, h_chunks, c_chunks = pl.pallas_call(
        functools.partial(_qlstm_kernel, ev=ev),
        out_shape=(
            jax.ShapeDtypeStruct((Bp, T_pad), jnp.float32),   # projected outputs
            jax.ShapeDtypeStruct((NC, Bp, Hp), jnp.float32),  # per-chunk h_last
            jax.ShapeDtypeStruct((NC, Bp, Hp), jnp.float32),  # per-chunk c_last
        ),
        grid=(NC,),
        in_specs=[
            pl.BlockSpec(memory_space=pltpu.MemorySpace.SMEM),   # bias (1,)
            pl.BlockSpec((Bp, Hp), lambda i: (0, 0)),            # c0 (constant block)
            pl.BlockSpec((1, Hp), lambda i: (0, 0)),             # proj weight
            pl.BlockSpec((TT, 1), lambda i: (i, 0)),             # ev^(t+1) per chunk
            pl.BlockSpec((TT, 1), lambda i: (i, 0)),             # offset per chunk
        ],
        out_specs=(
            pl.BlockSpec((Bp, TT), lambda i: (0, i)),            # lane-dense out slab
            pl.BlockSpec((1, Bp, Hp), lambda i: (i, 0, 0)),      # per-chunk h_last
            pl.BlockSpec((1, Bp, Hp), lambda i: (i, 0, 0)),      # per-chunk c_last
        ),
        compiler_params=pltpu.CompilerParams(
            # Chunks are independent (closed form) -> v7x can split them across TCs.
            dimension_semantics=("parallel",),
        ),
    )(bias, c0, w, a_full, s_full)

    outs = out_pad[:B, :T].T                 # (T, B)
    h_T = h_chunks[NC - 1, :B, :H]
    c_T = c_chunks[NC - 1, :B, :H]
    return outs, h_T, c_T


def qlstm_forward(x, hidden, params):
    """Module-equivalent single step: returns (output (B, 1), (h_new, c_new)).

    x and h_t are accepted for API fidelity only; the parameter-free VQCs make
    the gate values independent of them.
    """
    h_t, c_t = hidden
    del h_t  # never consumed by the reference forward's math
    outs, h_new, c_new = _qlstm_run(
        c_t, params["proj_w"], params["proj_b"], params["num_qubits"], num_steps=1)
    output = outs[0].reshape(x.shape[0], -1)   # == output.view(x.size(0), -1)
    return output, (h_new, c_new)


def qlstm_forward_seq(x_seq, hidden, params):
    """Multi-step driver: equivalent to calling the module's forward once per time
    step of x_seq (B, T, input_size) while threading (h, c), executed as a SINGLE
    pallas_call using the constant-gate closed form (no sequential dependence).

    Returns (outputs (T, B), (h_T, c_T)).
    """
    h_t, c_t = hidden
    del h_t
    num_steps = x_seq.shape[1]
    outs, h_new, c_new = _qlstm_run(
        c_t, params["proj_w"], params["proj_b"], params["num_qubits"],
        num_steps=num_steps)
    return outs, (h_new, c_new)


def init_params(key, input_size, hidden_size, num_qubits=4):
    """Parameter init mirroring the module's __init__ (only forward-used ones matter)."""
    keys = jax.random.split(key, 6)
    bound = 1.0 / jnp.sqrt(jnp.float32(hidden_size))
    params = {
        "num_qubits": num_qubits,
        # projection: Linear(hidden_size, 1); stored lane-dense as (1, H)
        "proj_w": jax.random.uniform(keys[0], (1, hidden_size), jnp.float32, -bound, bound),
        # traced device scalar: no host float() sync, no recompiles under jit
        "proj_b": jax.random.uniform(keys[1], (), jnp.float32, -bound, bound),
        # created by __init__ but unused in forward (shape fidelity only)
        "theta_f": jax.random.normal(keys[2], (num_qubits,), jnp.float32),
        "theta_i": jax.random.normal(keys[3], (num_qubits,), jnp.float32),
        "theta_u": jax.random.normal(keys[4], (num_qubits,), jnp.float32),
        "theta_o": jax.random.normal(keys[5], (num_qubits,), jnp.float32),
    }
    return params


if __name__ == "__main__":
    input_size = 16
    hidden_size = 32
    num_qubits = 4
    B = 2
    T = 8

    key = jax.random.PRNGKey(0)
    k_p, k_x, k_h, k_c = jax.random.split(key, 4)

    params = init_params(k_p, input_size, hidden_size, num_qubits)

    x_seq = jax.random.normal(k_x, (B, T, input_size), jnp.float32)
    h_t = jax.random.normal(k_h, (B, hidden_size), jnp.float32)
    c_t = jax.random.normal(k_c, (B, hidden_size), jnp.float32)

    # Single step (exactly the module's forward) and fused T-step sequence.
    out1, (h1, c1) = qlstm_forward(x_seq[:, 0], (h_t, c_t), params)
    outs, (hT, cT) = qlstm_forward_seq(x_seq, (h_t, c_t), params)
    jax.block_until_ready((out1, h1, c1, outs, hT, cT))

    # ----- pure-JAX sequential reference -----
    ev = _vqc_expectation(num_qubits)
    w = params["proj_w"].reshape(hidden_size, 1)
    b = params["proj_b"]

    # single step
    c1_r = ev * c_t + ev * ev
    h1_r = ev * jnp.tanh(c1_r)
    out1_r = h1_r @ w + b
    assert jnp.allclose(c1, c1_r, rtol=1e-5, atol=1e-3), "c mismatch (single step)"
    assert jnp.allclose(h1, h1_r, rtol=1e-5, atol=1e-4), "h mismatch (single step)"
    assert jnp.allclose(out1, out1_r, rtol=1e-4, atol=1e-3), "out mismatch (single step)"

    # T-step sequence
    c_r = c_t
    h_r = None
    outs_r = []
    for _ in range(T):
        c_r = ev * c_r + ev * ev
        h_r = ev * jnp.tanh(c_r)
        outs_r.append((h_r @ w + b)[:, 0])
    outs_r = jnp.stack(outs_r, axis=0)  # (T, B)
    assert jnp.allclose(cT, c_r, rtol=1e-4, atol=1e-2), "c mismatch (sequence)"
    assert jnp.allclose(hT, h_r, rtol=1e-4, atol=1e-3), "h mismatch (sequence)"
    assert jnp.allclose(outs, outs_r, rtol=1e-4, atol=1e-3), "outs mismatch (sequence)"

    print("KERNEL_OK")
</pallas_src>

<mosaic_0001>
module attributes {stable_mosaic.version = 11 : i64} {
  func.func @_qlstm_kernel(%arg0: i32, %arg1: memref<1xf32, #tpu.memory_space<smem>>, %arg2: memref<8x128xf32, #tpu.memory_space<vmem>>, %arg3: memref<1x128xf32, #tpu.memory_space<vmem>>, %arg4: memref<8x1xf32, #tpu.memory_space<vmem>>, %arg5: memref<8x1xf32, #tpu.memory_space<vmem>>, %arg6: memref<8x8xf32, #tpu.memory_space<vmem>>, %arg7: memref<1x8x128xf32, #tpu.memory_space<vmem>>, %arg8: memref<1x8x128xf32, #tpu.memory_space<vmem>>) attributes {dimension_semantics = [#tpu.dimension_semantics<parallel>], iteration_bounds = array<i64: 1>, scalar_prefetch = 0 : i64, scratch_operands = 0 : i64, tpu.core_type = #tpu.core_type<tc>, window_params = [{transform_indices = @transform_0, window_bounds = array<i64: 1>}, {pipeline_mode = #tpu.pipeline_mode<synchronous>, transform_indices = @transform_1, window_bounds = array<i64: 8, 128>}, {pipeline_mode = #tpu.pipeline_mode<synchronous>, transform_indices = @transform_2, window_bounds = array<i64: 1, 128>}, {transform_indices = @transform_3, window_bounds = array<i64: 8, 1>}, {transform_indices = @transform_4, window_bounds = array<i64: 8, 1>}, {transform_indices = @transform_5, window_bounds = array<i64: 8, 8>}, {transform_indices = @transform_6, window_bounds = array<i64: 1, 8, 128>}, {transform_indices = @transform_7, window_bounds = array<i64: 1, 8, 128>}]} {
    %c0 = arith.constant 0 : index
    %c0_0 = arith.constant 0 : index
    %0 = vector.load %arg2[%c0, %c0_0] : memref<8x128xf32, #tpu.memory_space<vmem>>, vector<8x128xf32>
    %c0_1 = arith.constant 0 : index
    %c0_2 = arith.constant 0 : index
    %1 = vector.load %arg3[%c0_1, %c0_2] : memref<1x128xf32, #tpu.memory_space<vmem>>, vector<1x128xf32>
    %c0_3 = arith.constant 0 : index
    %c0_4 = arith.constant 0 : index
    %2 = vector.load %arg4[%c0_3, %c0_4] : memref<8x1xf32, #tpu.memory_space<vmem>>, vector<8x1xf32>
    %c0_5 = arith.constant 0 : index
    %c0_6 = arith.constant 0 : index
    %3 = vector.load %arg5[%c0_5, %c0_6] : memref<8x1xf32, #tpu.memory_space<vmem>>, vector<8x1xf32>
    %c0_7 = arith.constant 0 : index
    %4 = memref.load %arg1[%c0_7] : memref<1xf32, #tpu.memory_space<smem>>
    %5 = vector.shape_cast %0 : vector<8x128xf32> to vector<8x1x128xf32>
    %6 = vector.shape_cast %2 : vector<8x1xf32> to vector<1x8x1xf32>
    %7 = vector.broadcast %6 : vector<1x8x1xf32> to vector<8x8x128xf32>
    %8 = vector.broadcast %5 : vector<8x1x128xf32> to vector<8x8x128xf32>
    %9 = arith.mulf %7, %8 : vector<8x8x128xf32>
    %10 = vector.shape_cast %3 : vector<8x1xf32> to vector<1x8x1xf32>
    %11 = vector.broadcast %10 : vector<1x8x1xf32> to vector<8x8x128xf32>
    %12 = arith.addf %9, %11 : vector<8x8x128xf32>
    %13 = math.tanh %12 : vector<8x8x128xf32>
    %cst = arith.constant 10.333333 : f32
    %14 = vector.broadcast %cst : f32 to vector<8x8x128xf32>
    %15 = arith.mulf %14, %13 : vector<8x8x128xf32>
    %16 = vector.shape_cast %1 : vector<1x128xf32> to vector<1x1x128xf32>
    %17 = vector.broadcast %16 : vector<1x1x128xf32> to vector<8x8x128xf32>
    %18 = arith.mulf %15, %17 : vector<8x8x128xf32>
    %cst_8 = arith.constant dense<0.000000e+00> : vector<8x8xf32>
    %19 = vector.multi_reduction <add>, %18, %cst_8 [2] : vector<8x8x128xf32> to vector<8x8xf32>
    %20 = vector.broadcast %4 : f32 to vector<8x8xf32>
    %21 = arith.addf %19, %20 : vector<8x8xf32>
    %c0_9 = arith.constant 0 : index
    %c0_10 = arith.constant 0 : index
    %22 = vector.load %arg6[%c0_9, %c0_10] : memref<8x8xf32, #tpu.memory_space<vmem>>, vector<8x8xf32>
    tpu.vector_store %arg6[%c0_9, %c0_10], %21 {strides = array<i32>} : memref<8x8xf32, #tpu.memory_space<vmem>>, vector<8x8xf32>,
    %23 = vector.extract_strided_slice %12 {offsets = [0, 7, 0], sizes = [8, 1, 128], strides = [1, 1, 1]} : vector<8x8x128xf32> to vector<8x1x128xf32>
    %24 = vector.shape_cast %23 : vector<8x1x128xf32> to vector<8x128xf32>
    %25 = vector.shape_cast %24 : vector<8x128xf32> to vector<1x8x128xf32>
    %c0_11 = arith.constant 0 : index
    %c0_12 = arith.constant 0 : index
    %c0_13 = arith.constant 0 : index
    %26 = vector.load %arg8[%c0_11, %c0_12, %c0_13] : memref<1x8x128xf32, #tpu.memory_space<vmem>>, vector<1x8x128xf32>
    tpu.vector_store %arg8[%c0_11, %c0_12, %c0_13], %25 {strides = array<i32>} : memref<1x8x128xf32, #tpu.memory_space<vmem>>, vector<1x8x128xf32>,
    %27 = vector.extract_strided_slice %15 {offsets = [0, 7, 0], sizes = [8, 1, 128], strides = [1, 1, 1]} : vector<8x8x128xf32> to vector<8x1x128xf32>
    %28 = vector.shape_cast %27 : vector<8x1x128xf32> to vector<8x128xf32>
    %29 = vector.shape_cast %28 : vector<8x128xf32> to vector<1x8x128xf32>
    %c0_14 = arith.constant 0 : index
    %c0_15 = arith.constant 0 : index
    %c0_16 = arith.constant 0 : index
    %30 = vector.load %arg7[%c0_14, %c0_15, %c0_16] : memref<1x8x128xf32, #tpu.memory_space<vmem>>, vector<1x8x128xf32>
    tpu.vector_store %arg7[%c0_14, %c0_15, %c0_16], %29 {strides = array<i32>} : memref<1x8x128xf32, #tpu.memory_space<vmem>>, vector<1x8x128xf32>,
    return
  }
  func.func @transform_0(%arg0: i32) -> i32 {
    %c0_i32 = arith.constant 0 : i32
    %c0_i32_0 = arith.constant 0 : i32
    return %c0_i32 : i32
  }
  func.func @transform_1(%arg0: i32) -> (i32, i32) {
    %c0_i32 = arith.constant 0 : i32
    %c0_i32_0 = arith.constant 0 : i32
    %c0_i32_1 = arith.constant 0 : i32
    return %c0_i32, %c0_i32_0 : i32, i32
  }
  func.func @transform_2(%arg0: i32) -> (i32, i32) {
    %c0_i32 = arith.constant 0 : i32
    %c0_i32_0 = arith.constant 0 : i32
    %c0_i32_1 = arith.constant 0 : i32
    return %c0_i32, %c0_i32_0 : i32, i32
  }
  func.func @transform_3(%arg0: i32) -> (i32, i32) {
    %c0_i32 = arith.constant 0 : i32
    %c0_i32_0 = arith.constant 0 : i32
    return %arg0, %c0_i32 : i32, i32
  }
  func.func @transform_4(%arg0: i32) -> (i32, i32) {
    %c0_i32 = arith.constant 0 : i32
    %c0_i32_0 = arith.constant 0 : i32
    return %arg0, %c0_i32 : i32, i32
  }
  func.func @transform_5(%arg0: i32) -> (i32, i32) {
    %c0_i32 = arith.constant 0 : i32
    %c0_i32_0 = arith.constant 0 : i32
    return %c0_i32, %arg0 : i32, i32
  }
  func.func @transform_6(%arg0: i32) -> (i32, i32, i32) {
    %c0_i32 = arith.constant 0 : i32
    %c0_i32_0 = arith.constant 0 : i32
    %c0_i32_1 = arith.constant 0 : i32
    return %arg0, %c0_i32, %c0_i32_0 : i32, i32, i32
  }
  func.func @transform_7(%arg0: i32) -> (i32, i32, i32) {
    %c0_i32 = arith.constant 0 : i32
    %c0_i32_0 = arith.constant 0 : i32
    %c0_i32_1 = arith.constant 0 : i32
    return %arg0, %c0_i32, %c0_i32_0 : i32, i32, i32
  }
}

</mosaic_0001>

<llo_original>
// kernel: tpu_custom_call.1
$region0: #{tpu_custom_call.1}
  #allocation0 [shape = 'u32[]', space=smem, size = 0x4, offset = 0x4, fixed_abs, tag = 'smem constant byte address 0x4 - core index']
  #allocation1 [shape = 'u32[144,128]{1,0:T(1,128)}', space=vmem, size = 0x12000, scoped, tag = 'internal scratch']
  #allocation2 [shape = 'f32[1]{0:T(128)S(6)}', space=smem, size = 0x200, scoped, tag = 'scoped memory for tpu_custom_call.1']
  %s0 = inlined_call_operand.<no memory space> [shape: f32[1], index: 0, kind: input, shape index: {}]
  %s1 = inlined_call_operand.vmem [shape: f32[8,128], index: 1, kind: input, shape index: {}]
  %s2 = inlined_call_operand.vmem [shape: f32[1,128], index: 2, kind: input, shape index: {}]
  %s3 = inlined_call_operand.vmem [shape: f32[8,1], index: 3, kind: input, shape index: {}]
  %s4 = inlined_call_operand.vmem [shape: f32[8,1], index: 4, kind: input, shape index: {}]
  %s5 = inlined_call_operand.hbm [shape: f32[8,8], index: 5, kind: output, shape index: {0}]
  %s6 = inlined_call_operand.hbm [shape: f32[1,8,128], index: 6, kind: output, shape index: {1}]
  %s7 = inlined_call_operand.hbm [shape: f32[1,8,128], index: 7, kind: output, shape index: {2}]
  %8 = xla_tuple %s5, %s6, %s7
  %s9 = sld [smem:[#allocation0]]
  $region46: #{tpu_custom_call.1} parent=0
    _
  %s11 = ssub.s32 1, %s9
  %s12 = scalar_select 0, %s11, %s9
  %13 = sst [smem:[#allocation2]] %s0
  $region1: #{tpu_custom_call.1} parent=0
    #allocation3 [shape = 'u8[4096]{0}', space=vmem, size = 0x1000, scoped, tag = 'output window, operand 0, single buffered']
    #allocation4 [shape = 's32[1]{0}', space=sflag, size = 0x4, scoped, tag = 'scoped memory for tpu_custom_call.1']
    #allocation5 [shape = 'u8[4096]{0}', space=vmem, size = 0x1000, scoped, tag = 'output window, operand 1, single buffered']
    #allocation6 [shape = 's32[1]{0}', space=sflag, size = 0x4, scoped, tag = 'scoped memory for tpu_custom_call.1']
    #allocation7 [shape = 'u8[4096]{0}', space=vmem, size = 0x1000, scoped, tag = 'output window, operand 2, single buffered']
    %14 = vsyncpa [#allocation4], 0
    %15 = vsyncpa [#allocation6], 0
    // Predicated region
    $region2: #{tpu_custom_call.1} parent=1 // pred_check
      _
    $region3: #{tpu_custom_call.1} parent=1 // pred_check_branch
      %17 = sbr.rel (0) target = $region5
    $region4: #{tpu_custom_call.1} parent=1 // pred_region
      _
    $region5: #{tpu_custom_call.1} parent=1 // pred_fallthru
      _
    // Predicated region
    $region6: #{tpu_custom_call.1} parent=1 // pred_check
      _
    $region7: #{tpu_custom_call.1} parent=1 // pred_check_branch
      %19 = sbr.rel (0) target = $region9
    $region8: #{tpu_custom_call.1} parent=1 // pred_region
      _
    $region9: #{tpu_custom_call.1} parent=1 // pred_fallthru
      _
    // Predicated region
    $region10: #{tpu_custom_call.1} parent=1 // pred_check
      _
    $region11: #{tpu_custom_call.1} parent=1 // pred_check_branch
      %21 = sbr.rel (0) target = $region13
    $region12: #{tpu_custom_call.1} parent=1 // pred_region
      _
    $region13: #{tpu_custom_call.1} parent=1 // pred_fallthru
      _
    // Predicated region
    $region14: #{tpu_custom_call.1} parent=1 // pred_check
      _
    $region15: #{tpu_custom_call.1} parent=1 // pred_check_branch
      %23 = sbr.rel (0) target = $region17
    $region16: #{tpu_custom_call.1} parent=1 // pred_region
      _
    $region17: #{tpu_custom_call.1} parent=1 // pred_fallthru
      _
    // Predicated region
    $region18: #{tpu_custom_call.1} parent=1 // pred_check
      _
    $region19: #{tpu_custom_call.1} parent=1 // pred_check_branch
      %25 = sbr.rel (0) target = $region21
    $region20: #{tpu_custom_call.1} parent=1 // pred_region
      _
    $region21: #{tpu_custom_call.1} parent=1 // pred_fallthru
      _
    %v26 = vld [vmem:[%s1] sm:$0xff]
    %v27 = vld [vmem:[%s2] sm:$0x1]
    %v28 = vld [vmem:[%s3] sm:$0xff]
    %v29 = vld [vmem:[%s4] sm:$0xff]
    %s30 = sld [smem:[#allocation2]]
    %v32 = vcombine.high %v26, %v26
    %v34 = vunpack.c.l.s4 1966171168
    %v35 = vunpack.c.0.s8 %v34
    %v36 = vlaneseq
    %v37 = vshrl.u32 %v36, 7
    %v38 = vsub.s32 %v35, %v37
    %v39 = vrot.slane %v26, %v38
    %v41 = vunpack.c.l.s4 1966171168
    %v42 = vunpack.c.0.s8 %v41
    %v43 = vlaneseq
    %v44 = vshrl.u32 %v43, 7
    %v45 = vsub.s32 %v42, %v44
    %v46 = vrot.slane %v32, %v45
    %v47 = vcombine.high %v39, %v39
    %v48 = vcombine.high %v46, %v46
    %v50 = vunpack.c.l.s4 1966171168
    %v51 = vunpack.c.0.s8 %v50
    %v52 = vlaneseq
    %v53 = vshrl.u32 %v52, 7
    %v54 = vsub.s32 %v51, %v53
    %v55 = vrot.slane %v39, %v54
    %v57 = vunpack.c.l.s4 1966171168
    %v58 = vunpack.c.0.s8 %v57
    %v59 = vlaneseq
    %v60 = vshrl.u32 %v59, 7
    %v61 = vsub.s32 %v58, %v60
    %v62 = vrot.slane %v46, %v61
    %v64 = vunpack.c.l.s4 1966171168
    %v65 = vunpack.c.0.s8 %v64
    %v66 = vlaneseq
    %v67 = vshrl.u32 %v66, 7
    %v68 = vsub.s32 %v65, %v67
    %v69 = vrot.slane %v47, %v68
    %v71 = vunpack.c.l.s4 1966171168
    %v72 = vunpack.c.0.s8 %v71
    %v73 = vlaneseq
    %v74 = vshrl.u32 %v73, 7
    %v75 = vsub.s32 %v72, %v74
    %v76 = vrot.slane %v48, %v75
    %v77 = vcombine.high %v55, %v55
    %v78 = vcombine.high %v62, %v62
    %v79 = vcombine.high %v69, %v69
    %v80 = vcombine.high %v76, %v76
    %82 = vset.pattern.permute.xlu0 0
    %83 = vperm.xlu0 %82, %v28
    %v84 = vpop.permute.xlu0 %83
    %v86 = vlaneseq
    %v87 = vshrl.u32 %v86, 7
    %v88 = vsub.s32 0, %v87
    %v89 = vrot.slane %v55, %v88
    %v90 = vlaneseq
    %v91 = vshrl.u32 %v90, 7
    %v92 = vsub.s32 0, %v91
    %v93 = vrot.slane %v69, %v92
    %v94 = vlaneseq
    %v95 = vshrl.u32 %v94, 7
    %v96 = vsub.s32 0, %v95
    %v97 = vrot.slane %v77, %v96
    %v98 = vlaneseq
    %v99 = vshrl.u32 %v98, 7
    %v100 = vsub.s32 0, %v99
    %v101 = vrot.slane %v79, %v100
    %v102 = vlaneseq
    %v103 = vshrl.u32 %v102, 7
    %v104 = vsub.s32 0, %v103
    %v105 = vrot.slane %v62, %v104
    %v106 = vlaneseq
    %v107 = vshrl.u32 %v106, 7
    %v108 = vsub.s32 0, %v107
    %v109 = vrot.slane %v76, %v108
    %v110 = vlaneseq
    %v111 = vshrl.u32 %v110, 7
    %v112 = vsub.s32 0, %v111
    %v113 = vrot.slane %v78, %v112
    %v114 = vlaneseq
    %v115 = vshrl.u32 %v114, 7
    %v116 = vsub.s32 0, %v115
    %v117 = vrot.slane %v80, %v116
    %v126 = vmul.f32 %v84, %v89
    %v127 = vmul.f32 %v84, %v93
    %v128 = vmul.f32 %v84, %v97
    %v129 = vmul.f32 %v84, %v101
    %v130 = vmul.f32 %v84, %v105
    %v131 = vmul.f32 %v84, %v109
    %v132 = vmul.f32 %v84, %v113
    %v133 = vmul.f32 %v84, %v117
    %135 = vset.pattern.permute.xlu0 0
    %136 = vperm.xlu0 %135, %v29
    %v137 = vpop.permute.xlu0 %136
    %v139 = vadd.f32 %v126, %v137
    %v140 = vadd.f32 %v127, %v137
    %v141 = vadd.f32 %v128, %v137
    %v142 = vadd.f32 %v129, %v137
    %v143 = vadd.f32 %v130, %v137
    %v144 = vadd.f32 %v131, %v137
    %v145 = vadd.f32 %v132, %v137
    %v146 = vadd.f32 %v133, %v137
    %v147 = vtanh.pop %v139
    %v148 = vtanh.pop %v140
    %v149 = vtanh.pop %v141
    %v150 = vtanh.pop %v142
    %v151 = vtanh.pop %v143
    %v152 = vtanh.pop %v144
    %v153 = vtanh.pop %v145
    %v154 = vtanh.pop %v146
    %v155 = vmul.f32 %v147, 10.333333
    %v156 = vmul.f32 %v148, 10.333333
    %v157 = vmul.f32 %v149, 10.333333
    %v158 = vmul.f32 %v150, 10.333333
    %v159 = vmul.f32 %v151, 10.333333
    %v160 = vmul.f32 %v152, 10.333333
    %v161 = vmul.f32 %v153, 10.333333
    %v162 = vmul.f32 %v154, 10.333333
    %v164 = vlaneseq
    %v165 = vshrl.u32 %v164, 7
    %v166 = vsub.s32 0, %v165
    %v167 = vrot.slane %v27, %v166
    %v169 = vmul.f32 %v155, %v167
    %v170 = vmul.f32 %v156, %v167
    %v171 = vmul.f32 %v157, %v167
    %v172 = vmul.f32 %v158, %v167
    %v173 = vmul.f32 %v159, %v167
    %v174 = vmul.f32 %v160, %v167
    %v175 = vmul.f32 %v161, %v167
    %v176 = vmul.f32 %v162, %v167
    %177 = vadd.xlane.f32.xlu0 %v169
    %v178 = vpop.xlane.xlu0 %177
    %179 = vadd.xlane.f32.xlu0 %v170
    %v180 = vpop.xlane.xlu0 %179
    %181 = vadd.xlane.f32.xlu0 %v171
    %v182 = vpop.xlane.xlu0 %181
    %183 = vadd.xlane.f32.xlu0 %v172
    %v184 = vpop.xlane.xlu0 %183
    %185 = vadd.xlane.f32.xlu0 %v173
    %v186 = vpop.xlane.xlu0 %185
    %187 = vadd.xlane.f32.xlu0 %v174
    %v188 = vpop.xlane.xlu0 %187
    %189 = vadd.xlane.f32.xlu0 %v175
    %v190 = vpop.xlane.xlu0 %189
    %191 = vadd.xlane.f32.xlu0 %v176
    %v192 = vpop.xlane.xlu0 %191
    %v193 = vstv %s30
    %v194 = vadd.f32 %v178, %v193
    %v195 = vadd.f32 %v180, %v193
    %v196 = vadd.f32 %v182, %v193
    %v197 = vadd.f32 %v184, %v193
    %v198 = vadd.f32 %v186, %v193
    %v199 = vadd.f32 %v188, %v193
    %v200 = vadd.f32 %v190, %v193
    %v201 = vadd.f32 %v192, %v193
    %v210 = vlaneseq
    %v211 = vand.u32 %v210, 127
    %v212 = vlaneseq
    %v213 = vshrl.u32 %v212, 7
    %v214 = vsub.s32 %v211, %v213
    %v215 = vrot.slane %v194, %v214
    %v216 = vlaneseq
    %v217 = vshrl.u32 %v216, 7
    %v218 = vsub.s32 %v211, %v217
    %v219 = vrot.slane %v195, %v218
    %v220 = vlaneseq
    %v221 = vshrl.u32 %v220, 7
    %v222 = vsub.s32 %v211, %v221
    %v223 = vrot.slane %v196, %v222
    %v224 = vlaneseq
    %v225 = vshrl.u32 %v224, 7
    %v226 = vsub.s32 %v211, %v225
    %v227 = vrot.slane %v197, %v226
    %v228 = vlaneseq
    %v229 = vshrl.u32 %v228, 7
    %v230 = vsub.s32 %v211, %v229
    %v231 = vrot.slane %v198, %v230
    %v232 = vlaneseq
    %v233 = vshrl.u32 %v232, 7
    %v234 = vsub.s32 %v211, %v233
    %v235 = vrot.slane %v199, %v234
    %v236 = vlaneseq
    %v237 = vshrl.u32 %v236, 7
    %v238 = vsub.s32 %v211, %v237
    %v239 = vrot.slane %v200, %v238
    %v240 = vlaneseq
    %v241 = vshrl.u32 %v240, 7
    %v242 = vsub.s32 %v211, %v241
    %v243 = vrot.slane %v201, %v242
    %vm244 = vcmask 1041409
    %v245 = vsel %vm244, %v219, %v215
    %vm246 = vcmask 1042434
    %v247 = vsel %vm246, %v223, %v245
    %vm248 = vcmask 1043459
    %v249 = vsel %vm248, %v227, %v247
    %vm250 = vcmask 1044484
    %v251 = vsel %vm250, %v231, %v249
    %vm252 = vcmask 1045509
    %v253 = vsel %vm252, %v235, %v251
    %vm254 = vcmask 1046534
    %v255 = vsel %vm254, %v239, %v253
    %vm256 = vcmask 1047559
    %v257 = vsel %vm256, %v243, %v255
    %vm259 = vcmask 64512
    %260 = vst.msk [vmem:[#allocation3] sm:$0xff] %vm259, %v257
    %v269 = vrot.slane %v140, 7
    %v270 = vrot.slane %v141, 6
    %v271 = vsel %vm244, %v270, %v269
    %v272 = vrot.slane %v142, 5
    %v273 = vsel %vm246, %v272, %v271
    %v274 = vrot.slane %v143, 4
    %v275 = vsel %vm248, %v274, %v273
    %v276 = vrot.slane %v144, 3
    %v277 = vsel %vm250, %v276, %v275
    %v278 = vrot.slane %v145, 2
    %v279 = vsel %vm252, %v278, %v277
    %v280 = vrot.slane %v146, 1
    %v281 = vsel %vm254, %v280, %v279
    %284 = vst [vmem:[#allocation7 - $0x7] sm:$0x80] %v139
    %285 = vst [vmem:[#allocation7 + $0x1] sm:$0x7f] %v281
    %v294 = vrot.slane %v156, 7
    %v295 = vrot.slane %v157, 6
    %v296 = vsel %vm244, %v295, %v294
    %v297 = vrot.slane %v158, 5
    %v298 = vsel %vm246, %v297, %v296
    %v299 = vrot.slane %v159, 4
    %v300 = vsel %vm248, %v299, %v298
    %v301 = vrot.slane %v160, 3
    %v302 = vsel %vm250, %v301, %v300
    %v303 = vrot.slane %v161, 2
    %v304 = vsel %vm252, %v303, %v302
    %v305 = vrot.slane %v162, 1
    %v306 = vsel %vm254, %v305, %v304
    %309 = vst [vmem:[#allocation5 - $0x7] sm:$0x80] %v155
    %310 = vst [vmem:[#allocation5 + $0x1] sm:$0x7f] %v306
    // Predicated region
    $region22: #{tpu_custom_call.1} parent=1 // pred_check
      _
    $region23: #{tpu_custom_call.1} parent=1 // pred_check_branch
      %312 = sbr.rel (0) target = $region25
    $region24: #{tpu_custom_call.1} parent=1 // pred_region
      %s314 = ssub.s32 128, 128
      %315 = vsyncadd [#allocation4], %s314
      %s317 = sshll.u32 [#allocation3], 4
      %s318 = int_to_ptr.vmem [resolvable:$true] %s317
      %320 = dma.vmem_to_hbm [thread:$0]  %s318, 128, %s5, [#allocation4]
    $region25: #{tpu_custom_call.1} parent=1 // pred_fallthru
      _
    // Predicated region
    $region26: #{tpu_custom_call.1} parent=1 // pred_check
      _
    $region27: #{tpu_custom_call.1} parent=1 // pred_check_branch
      %322 = sbr.rel (0) target = $region29
    $region28: #{tpu_custom_call.1} parent=1 // pred_region
      %s324 = ssub.s32 128, 128
      %325 = vsyncadd [#allocation6], %s324
      %s327 = sshll.u32 [#allocation5], 4
      %s328 = int_to_ptr.vmem [resolvable:$true] %s327
      %330 = dma.vmem_to_hbm [thread:$0]  %s328, 128, %s6, [#allocation6]
    $region29: #{tpu_custom_call.1} parent=1 // pred_fallthru
      _
    // Predicated region
    $region30: #{tpu_custom_call.1} parent=1 // pred_check
      _
    $region31: #{tpu_custom_call.1} parent=1 // pred_check_branch
      %332 = sbr.rel (0) target = $region33
    $region32: #{tpu_custom_call.1} parent=1 // pred_region
      %s334 = ssub.s32 128, 128
      %335 = vsyncadd [#allocation6], %s334
      %s337 = sshll.u32 [#allocation7], 4
      %s338 = int_to_ptr.vmem [resolvable:$true] %s337
      %340 = dma.vmem_to_hbm [thread:$0]  %s338, 128, %s7, [#allocation6]
    $region33: #{tpu_custom_call.1} parent=1 // pred_fallthru
      _
    // Predicated region
    $region34: #{tpu_custom_call.1} parent=1 // pred_check
      _
    $region35: #{tpu_custom_call.1} parent=1 // pred_check_branch
      %342 = sbr.rel (0) target = $region37
    $region36: #{tpu_custom_call.1} parent=1 // pred_region
      %343 = dma.done [#allocation4], 128
    $region37: #{tpu_custom_call.1} parent=1 // pred_fallthru
      _
    // Predicated region
    $region38: #{tpu_custom_call.1} parent=1 // pred_check
      _
    $region39: #{tpu_custom_call.1} parent=1 // pred_check_branch
      %345 = sbr.rel (0) target = $region41
    $region40: #{tpu_custom_call.1} parent=1 // pred_region
      %346 = dma.done [#allocation6], 128
    $region41: #{tpu_custom_call.1} parent=1 // pred_fallthru
      _
    // Predicated region
    $region42: #{tpu_custom_call.1} parent=1 // pred_check
      _
    $region43: #{tpu_custom_call.1} parent=1 // pred_check_branch
      %348 = sbr.rel (0) target = $region45
    $region44: #{tpu_custom_call.1} parent=1 // pred_region
      %349 = dma.done [#allocation6], 128
    $region45: #{tpu_custom_call.1} parent=1 // pred_fallthru
      _
    %350 = vsyncpa [#allocation4], 1
    %351 = vsyncpa [#allocation6], 1

</llo_original>
